<compile_context>
chip_gen: v7x
topology: tpu7x:2x2x1
jax: 0.10.0
libtpu: 0.0.40
codegen_flags: <defaults>
</compile_context>

<pallas_src>
import functools

import jax
import jax.numpy as jnp
from jax import lax
from jax.experimental import pallas as pl
from jax.experimental.pallas import tpu as pltpu

_LANE = 128
_SUBLANE = 8
_VMEM_LIMIT_BYTES = 48 * 1024 * 1024   # scoped-VMEM request: safe on v5e/v6e/v7x
_DATA_BUDGET_BYTES = 28 * 1024 * 1024  # target for per-step blocks + temporaries


def _cdiv(a, b):
    return -(-a // b)


def _round_up(a, m):
    return _cdiv(a, m) * m


def _adain_full_hw_kernel(x_ref, wb_ref, o_ref, *, eps, hw_true, hw_pad):
    """Single-sweep path: each block spans the full (lane-padded) spatial dim."""
    x = x_ref[...].astype(jnp.float32)                        # (R, HWp)
    inv_n = jnp.float32(1.0 / hw_true)
    # Zero lane-padding is sum-neutral; divide by the true spatial size.
    mean = jnp.sum(x, axis=-1, keepdims=True) * inv_n
    if hw_pad != hw_true:
        lane = lax.broadcasted_iota(jnp.int32, (1, hw_pad), 1)
        xc = jnp.where(lane < hw_true, x - mean, 0.0)
    else:
        xc = x - mean
    var = jnp.sum(xc * xc, axis=-1, keepdims=True) * inv_n    # biased variance
    wb = wb_ref[...].astype(jnp.float32)                      # (R, 2) = [w | b]
    scale = wb[:, 0:1] * lax.rsqrt(var + eps)                 # EUP rsqrt
    shift = wb[:, 1:2] - mean * scale
    # y = x*scale + shift  (avoids keeping a centered copy live for the store)
    o_ref[...] = (x * scale + shift).astype(o_ref.dtype)


def _adain_spatial_tiled_kernel(x_ref, wb_ref, o_ref,
                                sum_ref, sumsq_ref, scale_ref, shift_ref,
                                *, eps, hw_true, nhw):
    """Two-sweep path over HW tiles: accumulate stats, then normalize+store."""
    j = pl.program_id(1)

    @pl.when(j == 0)
    def _():
        sum_ref[...] = jnp.zeros_like(sum_ref)
        sumsq_ref[...] = jnp.zeros_like(sumsq_ref)

    @pl.when(j < nhw)                              # sweep 1: statistics
    def _():
        x = x_ref[...].astype(jnp.float32)
        sum_ref[...] += jnp.sum(x, axis=-1, keepdims=True)
        sumsq_ref[...] += jnp.sum(x * x, axis=-1, keepdims=True)

    @pl.when(j == nhw)                             # finalize per-row stats
    def _():
        inv_n = jnp.float32(1.0 / hw_true)
        mean = sum_ref[...] * inv_n
        var = jnp.maximum(sumsq_ref[...] * inv_n - mean * mean, 0.0)
        wb = wb_ref[...].astype(jnp.float32)
        scale = wb[:, 0:1] * lax.rsqrt(var + eps)
        scale_ref[...] = scale
        shift_ref[...] = wb[:, 1:2] - mean * scale

    @pl.when(j >= nhw)                             # sweep 2: normalize + store
    def _():
        x = x_ref[...].astype(jnp.float32)
        o_ref[...] = (x * scale_ref[...] + shift_ref[...]).astype(o_ref.dtype)


def adaptive_instance_norm_2d(x, weight, bias, *, eps=1e-5, hw_tile=None):
    """x: (B, C, H, W); weight, bias: (B*C,) — PyTorch AdaIN semantics."""
    B, C, H, W = x.shape
    BC, HW = B * C, H * W
    itemsize = jnp.dtype(x.dtype).itemsize

    # VMEM bytes per block-row spanning `hw_span` lanes:
    #   2x double-buffered input + 2x double-buffered output blocks,
    #   ~2 f32 full-width temporaries, plus ~4 KiB/row for the weight/bias
    #   block (lane-padded internally) and per-row scratch (counted generously).
    def per_row_bytes(hw_span):
        return hw_span * (4 * itemsize + 8) + 4096

    hw_pad_full = _round_up(HW, _LANE)
    BC8 = _round_up(BC, _SUBLANE)

    if hw_tile is not None:                        # explicit override (testing)
        hw_tile = max(_LANE, _round_up(int(hw_tile), _LANE))
        hw_tile = min(hw_tile, hw_pad_full)
    elif per_row_bytes(hw_pad_full) * _SUBLANE <= _DATA_BUDGET_BYTES:
        hw_tile = hw_pad_full                      # whole spatial extent fits
    else:
        # Spatial tiling for huge images: aim for a few hundred rows per block.
        row_target = min(BC8, 512)
        hw_tile = _DATA_BUDGET_BYTES // (per_row_bytes(1) * row_target)
        hw_tile = max(_LANE, (hw_tile // _LANE) * _LANE)
        hw_tile = min(hw_tile, hw_pad_full)

    hw_pad = _round_up(HW, hw_tile)
    nhw = hw_pad // hw_tile

    # Row tile: largest multiple of 8 that keeps the per-step working set
    # inside the VMEM budget, balanced so the tail tile isn't mostly padding,
    # split >=2 ways when cheap so both v7x TensorCores get work.
    row_cap = max(_SUBLANE,
                  (_DATA_BUDGET_BYTES // per_row_bytes(hw_tile))
                  // _SUBLANE * _SUBLANE)
    row_tile = min(row_cap, BC8)
    grid_rows = _cdiv(BC8, row_tile)
    row_tile = _round_up(_cdiv(BC8, grid_rows), _SUBLANE)
    if grid_rows == 1 and BC8 > _SUBLANE and BC8 % (2 * _SUBLANE) == 0:
        grid_rows, row_tile = 2, BC8 // 2
    BC_pad = grid_rows * row_tile

    x2 = x.reshape(BC, HW)
    if BC_pad != BC or hw_pad != HW:
        x2 = jnp.pad(x2, ((0, BC_pad - BC), (0, hw_pad - HW)))
    wb = jnp.stack([weight.reshape(BC).astype(jnp.float32),
                    bias.reshape(BC).astype(jnp.float32)], axis=-1)  # (BC, 2)
    if BC_pad != BC:
        wb = jnp.pad(wb, ((0, BC_pad - BC), (0, 0)))

    if nhw == 1:
        kernel = functools.partial(_adain_full_hw_kernel, eps=float(eps),
                                   hw_true=HW, hw_pad=hw_pad)
        out2 = pl.pallas_call(
            kernel,
            out_shape=jax.ShapeDtypeStruct((BC_pad, hw_pad), x.dtype),
            grid_spec=pltpu.PrefetchScalarGridSpec(
                num_scalar_prefetch=0,
                grid=(grid_rows,),
                in_specs=[
                    pl.BlockSpec((row_tile, hw_pad), lambda i: (i, 0)),
                    pl.BlockSpec((row_tile, 2), lambda i: (i, 0)),
                ],
                out_specs=pl.BlockSpec((row_tile, hw_pad), lambda i: (i, 0)),
            ),
            compiler_params=pltpu.CompilerParams(
                dimension_semantics=("parallel",),
                vmem_limit_bytes=_VMEM_LIMIT_BYTES,
            ),
        )(x2, wb)
    else:
        kernel = functools.partial(_adain_spatial_tiled_kernel, eps=float(eps),
                                   hw_true=HW, nhw=nhw)
        out2 = pl.pallas_call(
            kernel,
            out_shape=jax.ShapeDtypeStruct((BC_pad, hw_pad), x.dtype),
            grid_spec=pltpu.PrefetchScalarGridSpec(
                num_scalar_prefetch=0,
                grid=(grid_rows, 2 * nhw),        # sweep HW tiles twice
                in_specs=[
                    pl.BlockSpec((row_tile, hw_tile),
                                 lambda i, j: (i, j % nhw)),
                    pl.BlockSpec((row_tile, 2), lambda i, j: (i, 0)),
                ],
                out_specs=pl.BlockSpec(
                    (row_tile, hw_tile),
                    lambda i, j: (i, jnp.maximum(j - nhw, 0))),
                scratch_shapes=[
                    pltpu.VMEM((row_tile, 1), jnp.float32),  # running sum
                    pltpu.VMEM((row_tile, 1), jnp.float32),  # running sum(x^2)
                    pltpu.VMEM((row_tile, 1), jnp.float32),  # scale
                    pltpu.VMEM((row_tile, 1), jnp.float32),  # shift
                ],
            ),
            compiler_params=pltpu.CompilerParams(
                dimension_semantics=("parallel", "arbitrary"),
                vmem_limit_bytes=_VMEM_LIMIT_BYTES,
            ),
        )(x2, wb)

    return out2[:BC, :HW].reshape(B, C, H, W)


def _reference(x, weight, bias, eps=1e-5):
    B, C, H, W = x.shape
    xr = x.reshape(B * C, H * W).astype(jnp.float32)
    mean = xr.mean(axis=-1, keepdims=True)
    var = ((xr - mean) ** 2).mean(axis=-1, keepdims=True)
    y = ((xr - mean) / jnp.sqrt(var + eps)
         * weight.astype(jnp.float32)[:, None]
         + bias.astype(jnp.float32)[:, None])
    return y.reshape(B, C, H, W).astype(x.dtype)


if __name__ == "__main__":
    key = jax.random.PRNGKey(0)

    # Case 1: primary small shape (single-sweep, full-HW path).
    B, C, H, W = 2, 4, 16, 16
    k1, k2, k3, key = jax.random.split(key, 4)
    x = jax.random.normal(k1, (B, C, H, W), dtype=jnp.float32)
    # AdaIN weight/bias are assigned externally with shape (B*C,).
    weight = 1.0 + 0.1 * jax.random.normal(k2, (B * C,), dtype=jnp.float32)
    bias = 0.1 * jax.random.normal(k3, (B * C,), dtype=jnp.float32)

    out = jax.block_until_ready(adaptive_instance_norm_2d(x, weight, bias))
    ref = _reference(x, weight, bias)
    assert out.shape == (B, C, H, W)
    assert jnp.allclose(out, ref, atol=2e-4, rtol=2e-4), "full-HW path mismatch"

    # Case 2: exercise the spatial-tiled (two-sweep) path at a small shape.
    out_tiled = jax.block_until_ready(
        adaptive_instance_norm_2d(x, weight, bias, hw_tile=128))
    assert jnp.allclose(out_tiled, ref, atol=2e-4, rtol=2e-4), \
        "spatial-tiled path mismatch"

    # Case 3: ragged shape — BC not a multiple of 8, HW not a multiple of 128.
    B2, C2, H2, W2 = 1, 6, 7, 7
    k4, k5, k6, key = jax.random.split(key, 4)
    x2 = jax.random.normal(k4, (B2, C2, H2, W2), dtype=jnp.float32)
    w2 = 1.0 + 0.1 * jax.random.normal(k5, (B2 * C2,), dtype=jnp.float32)
    b2 = 0.1 * jax.random.normal(k6, (B2 * C2,), dtype=jnp.float32)
    out2 = jax.block_until_ready(adaptive_instance_norm_2d(x2, w2, b2))
    assert jnp.allclose(out2, _reference(x2, w2, b2), atol=2e-4, rtol=2e-4), \
        "ragged-shape path mismatch"

    print("KERNEL_OK")
</pallas_src>

<mosaic_0001>
module attributes {stable_mosaic.version = 11 : i64} {
  func.func @_adain_full_hw_kernel(%arg0: i32, %arg1: memref<8x256xf32, #tpu.memory_space<vmem>>, %arg2: memref<8x2xf32, #tpu.memory_space<vmem>>, %arg3: memref<8x256xf32, #tpu.memory_space<vmem>>) attributes {dimension_semantics = [#tpu.dimension_semantics<parallel>], iteration_bounds = array<i64: 1>, scalar_prefetch = 0 : i64, scratch_operands = 0 : i64, tpu.core_type = #tpu.core_type<tc>, window_params = [{transform_indices = @transform_0, window_bounds = array<i64: 8, 256>}, {transform_indices = @transform_1, window_bounds = array<i64: 8, 2>}, {transform_indices = @transform_2, window_bounds = array<i64: 8, 256>}]} {
    %c0 = arith.constant 0 : index
    %c0_0 = arith.constant 0 : index
    %0 = vector.load %arg1[%c0, %c0_0] : memref<8x256xf32, #tpu.memory_space<vmem>>, vector<8x256xf32>
    %cst = arith.constant dense<0.000000e+00> : vector<8xf32>
    %1 = vector.multi_reduction <add>, %0, %cst [1] : vector<8x256xf32> to vector<8xf32>
    %2 = vector.shape_cast %1 : vector<8xf32> to vector<8x1xf32>
    %cst_1 = arith.constant 3.906250e-03 : f32
    %3 = vector.broadcast %cst_1 : f32 to vector<8x1xf32>
    %4 = arith.mulf %2, %3 : vector<8x1xf32>
    %5 = vector.broadcast %4 : vector<8x1xf32> to vector<8x256xf32>
    %6 = arith.subf %0, %5 : vector<8x256xf32>
    %7 = arith.mulf %6, %6 : vector<8x256xf32>
    %cst_2 = arith.constant dense<0.000000e+00> : vector<8xf32>
    %8 = vector.multi_reduction <add>, %7, %cst_2 [1] : vector<8x256xf32> to vector<8xf32>
    %9 = vector.shape_cast %8 : vector<8xf32> to vector<8x1xf32>
    %cst_3 = arith.constant 3.906250e-03 : f32
    %10 = vector.broadcast %cst_3 : f32 to vector<8x1xf32>
    %11 = arith.mulf %9, %10 : vector<8x1xf32>
    %c0_4 = arith.constant 0 : index
    %c0_5 = arith.constant 0 : index
    %12 = vector.load %arg2[%c0_4, %c0_5] : memref<8x2xf32, #tpu.memory_space<vmem>>, vector<8x2xf32>
    %13 = vector.extract_strided_slice %12 {offsets = [0, 0], sizes = [8, 1], strides = [1, 1]} : vector<8x2xf32> to vector<8x1xf32>
    %cst_6 = arith.constant 9.99999974E-6 : f32
    %14 = vector.broadcast %cst_6 : f32 to vector<8x1xf32>
    %15 = arith.addf %11, %14 : vector<8x1xf32>
    %16 = math.rsqrt %15 : vector<8x1xf32>
    %17 = arith.mulf %13, %16 : vector<8x1xf32>
    %18 = vector.extract_strided_slice %12 {offsets = [0, 1], sizes = [8, 1], strides = [1, 1]} : vector<8x2xf32> to vector<8x1xf32>
    %19 = arith.mulf %4, %17 : vector<8x1xf32>
    %20 = arith.subf %18, %19 : vector<8x1xf32>
    %21 = vector.broadcast %17 : vector<8x1xf32> to vector<8x256xf32>
    %22 = arith.mulf %0, %21 : vector<8x256xf32>
    %23 = vector.broadcast %20 : vector<8x1xf32> to vector<8x256xf32>
    %24 = arith.addf %22, %23 : vector<8x256xf32>
    %c0_7 = arith.constant 0 : index
    %c0_8 = arith.constant 0 : index
    %25 = vector.load %arg3[%c0_7, %c0_8] : memref<8x256xf32, #tpu.memory_space<vmem>>, vector<8x256xf32>
    tpu.vector_store %arg3[%c0_7, %c0_8], %24 {strides = array<i32>} : memref<8x256xf32, #tpu.memory_space<vmem>>, vector<8x256xf32>,
    return
  }
  func.func @transform_0(%arg0: i32) -> (i32, i32) {
    %c0_i32 = arith.constant 0 : i32
    %c0_i32_0 = arith.constant 0 : i32
    return %arg0, %c0_i32 : i32, i32
  }
  func.func @transform_1(%arg0: i32) -> (i32, i32) {
    %c0_i32 = arith.constant 0 : i32
    %c0_i32_0 = arith.constant 0 : i32
    return %arg0, %c0_i32 : i32, i32
  }
  func.func @transform_2(%arg0: i32) -> (i32, i32) {
    %c0_i32 = arith.constant 0 : i32
    %c0_i32_0 = arith.constant 0 : i32
    return %arg0, %c0_i32 : i32, i32
  }
}

</mosaic_0001>

<llo_original>
// kernel: tpu_custom_call.1
$region0: #{tpu_custom_call.1}
  #allocation0 [shape = 'u32[]', space=smem, size = 0x4, offset = 0x4, fixed_abs, tag = 'smem constant byte address 0x4 - core index']
  #allocation1 [shape = 'u32[144,128]{1,0:T(1,128)}', space=vmem, size = 0x12000, scoped, tag = 'internal scratch']
  %s0 = inlined_call_operand.hbm [shape: f32[8,256], index: 0, kind: input, shape index: {}]
  %s1 = inlined_call_operand.vmem [shape: f32[8,2], index: 1, kind: input, shape index: {}]
  %s2 = inlined_call_operand.hbm [shape: f32[8,256], index: 2, kind: output, shape index: {}]
  %s3 = sld [smem:[#allocation0]]
  $region22: #{tpu_custom_call.1} parent=0
    _
  %s5 = ssub.s32 1, %s3
  %s6 = scalar_select 0, %s5, %s3
  $region1: #{tpu_custom_call.1} parent=0
    #allocation2 [shape = 'u8[8192]{0}', space=vmem, size = 0x2000, scoped, tag = 'input window, operand 0, single buffered']
    #allocation3 [shape = 's32[1]{0}', space=sflag, size = 0x4, scoped, tag = 'scoped memory for tpu_custom_call.1']
    #allocation4 [shape = 's32[1]{0}', space=sflag, size = 0x4, scoped, tag = 'scoped memory for tpu_custom_call.1']
    #allocation5 [shape = 'u8[8192]{0}', space=vmem, size = 0x2000, scoped, tag = 'output window, operand 0, single buffered']
    %7 = vsyncpa [#allocation3], 0
    %8 = vsyncpa [#allocation4], 0
    // Predicated region
    $region2: #{tpu_custom_call.1} parent=1 // pred_check
      _
    $region3: #{tpu_custom_call.1} parent=1 // pred_check_branch
      %10 = sbr.rel (0) target = $region5
    $region4: #{tpu_custom_call.1} parent=1 // pred_region
      %s12 = ssub.s32 256, 256
      %13 = vsyncadd [#allocation3], %s12
      %s15 = sshll.u32 [#allocation2], 4
      %s16 = int_to_ptr.vmem [resolvable:$true] %s15
      %18 = dma.hbm_to_vmem [thread:$0]  %s0, 256, %s16, [#allocation3]
    $region5: #{tpu_custom_call.1} parent=1 // pred_fallthru
      _
    // Predicated region
    $region6: #{tpu_custom_call.1} parent=1 // pred_check
      _
    $region7: #{tpu_custom_call.1} parent=1 // pred_check_branch
      %20 = sbr.rel (0) target = $region9
    $region8: #{tpu_custom_call.1} parent=1 // pred_region
      _
    $region9: #{tpu_custom_call.1} parent=1 // pred_fallthru
      _
    // Predicated region
    $region10: #{tpu_custom_call.1} parent=1 // pred_check
      _
    $region11: #{tpu_custom_call.1} parent=1 // pred_check_branch
      %22 = sbr.rel (0) target = $region13
    $region12: #{tpu_custom_call.1} parent=1 // pred_region
      %23 = dma.done [#allocation3], 256
    $region13: #{tpu_custom_call.1} parent=1 // pred_fallthru
      _
    %v24 = vld [vmem:[#allocation2] sm:$0xff]
    %v25 = vld [vmem:[#allocation2 + $0x8] sm:$0xff]
    %v26 = vadd.f32 %v24, %v25
    %27 = vadd.xlane.f32.xlu0 %v26
    %v28 = vpop.xlane.xlu0 %27
    %v29 = vmul.f32 %v28, 0.00390625
    %v30 = vsub.f32 %v24, %v29
    %v31 = vsub.f32 %v25, %v29
    %v32 = vmul.f32 %v30, %v30
    %v33 = vmul.f32 %v31, %v31
    %v34 = vadd.f32 %v32, %v33
    %35 = vadd.xlane.f32.xlu0 %v34
    %v36 = vpop.xlane.xlu0 %35
    %v37 = vmul.f32 %v36, 0.00390625
    %v38 = vld [vmem:[%s1] sm:$0xff]
    %v39 = vadd.f32 %v37, 1e-05
    %v40 = vrsqrt.pop %v39
    %v41 = vmul.f32 %v38, %v40
    %v42 = vmul.f32 %v29, %v41
    %44 = vrot.lane.b32.xlu0 %v42, 1
    %v45 = vpop.permute.xlu0 %44
    %v47 = vsub.f32 %v38, %v45
    %49 = vset.pattern.permute.xlu0 0
    %50 = vperm.xlu0 %49, %v41
    %v51 = vpop.permute.xlu0 %50
    %v53 = vmul.f32 %v24, %v51
    %v54 = vmul.f32 %v25, %v51
    %56 = vset.pattern.permute.xlu0 1
    %57 = vperm.xlu0 %56, %v47
    %v58 = vpop.permute.xlu0 %57
    %v60 = vadd.f32 %v53, %v58
    %v61 = vadd.f32 %v54, %v58
    %62 = vst [vmem:[#allocation5] sm:$0xff] %v60
    %63 = vst [vmem:[#allocation5 + $0x8] sm:$0xff] %v61
    // Predicated region
    $region14: #{tpu_custom_call.1} parent=1 // pred_check
      _
    $region15: #{tpu_custom_call.1} parent=1 // pred_check_branch
      %65 = sbr.rel (0) target = $region17
    $region16: #{tpu_custom_call.1} parent=1 // pred_region
      %s67 = ssub.s32 256, 256
      %68 = vsyncadd [#allocation4], %s67
      %s70 = sshll.u32 [#allocation5], 4
      %s71 = int_to_ptr.vmem [resolvable:$true] %s70
      %73 = dma.vmem_to_hbm [thread:$0]  %s71, 256, %s2, [#allocation4]
    $region17: #{tpu_custom_call.1} parent=1 // pred_fallthru
      _
    // Predicated region
    $region18: #{tpu_custom_call.1} parent=1 // pred_check
      _
    $region19: #{tpu_custom_call.1} parent=1 // pred_check_branch
      %75 = sbr.rel (0) target = $region21
    $region20: #{tpu_custom_call.1} parent=1 // pred_region
      %76 = dma.done [#allocation4], 256
    $region21: #{tpu_custom_call.1} parent=1 // pred_fallthru
      _
    %77 = vsyncpa [#allocation3], 1
    %78 = vsyncpa [#allocation4], 1

</llo_original>
